<compile_context>
chip_gen: v7x
topology: tpu7x:2x2x1
jax: 0.10.0
libtpu: 0.0.40
codegen_flags: <defaults>
</compile_context>

<pallas_src>
import functools

import jax
import jax.numpy as jnp
import numpy as np
from jax.experimental import pallas as pl
from jax.experimental.pallas import tpu as pltpu


# ----------------------------------------------------------------------------
# Kernel
# ----------------------------------------------------------------------------
def _lb_loss_kernel(mask_ref, *refs, num_layers):
    """One sequence tile: masked per-expert sums accumulated per layer on the MXU.

    mask_ref : [B, 1, tS] attention-mask tile in the compute dtype.
    refs     : num_layers router-weight tiles [B, tS, E],
               num_layers expert-mask  tiles [B, tS, E] (any dtype; cast here),
               then two output blocks [1, B, E] f32
               (tokens-per-expert partial, router-prob-per-expert partial).
    """
    rw_refs = refs[:num_layers]
    em_refs = refs[num_layers:2 * num_layers]
    tpe_out = refs[2 * num_layers]
    rppe_out = refs[2 * num_layers + 1]

    mask = mask_ref[...]                                   # [B, 1, tS]
    cdt = mask.dtype

    def masked_sum(x):
        # [B, 1, tS] x [B, tS, E] -> [B, 1, E]; f32 accumulation on the MXU.
        return jnp.einsum('bxs,bse->bxe', mask, x.astype(cdt),
                          preferred_element_type=jnp.float32)

    tpe = masked_sum(em_refs[0][...])
    rppe = masked_sum(rw_refs[0][...])
    for i in range(1, num_layers):
        tpe = tpe + masked_sum(em_refs[i][...])
        rppe = rppe + masked_sum(rw_refs[i][...])

    tpe_out[0] = tpe[:, 0, :]                              # [B, E]
    rppe_out[0] = rppe[:, 0, :]                            # [B, E]


# ----------------------------------------------------------------------------
# VMEM / tiling planning (padding- and generation-aware)
# ----------------------------------------------------------------------------
def _rup(x, m):
    return ((x + m - 1) // m) * m


def _sublane(itemsize):
    # sublane tile of the second-to-last dim: 8 for f32, 16 for bf16, 32 for i8
    return max(8, 32 // max(int(itemsize), 1))


def _vmem_budget_bytes():
    """(budget, physical_capacity) in bytes; budget = 3/4 of physical VMEM."""
    cap = 64 << 20  # conservative default (v7x per-TC)
    try:
        info = pltpu.get_tpu_info()
        cap_attr = getattr(info, "vmem_capacity_bytes", None)
        if cap_attr:
            cap = int(cap_attr)
    except Exception:
        pass
    return (cap * 3) // 4, cap


def _block_bytes(tile_s, num_layers, batch, experts,
                 rw_isz, em_isz, mask_isz):
    """Padded VMEM footprint of one grid step, incl. double buffering."""
    e_pad = _rup(experts, 128)                          # lane padding of E
    rw = batch * _rup(tile_s, _sublane(rw_isz)) * e_pad * rw_isz
    em = batch * _rup(tile_s, _sublane(em_isz)) * e_pad * em_isz
    data = num_layers * (rw + em)
    mask = batch * _sublane(mask_isz) * _rup(tile_s, 128) * mask_isz
    outs = 2 * _rup(batch, 8) * e_pad * 4               # two [1,B,E] f32 blocks
    tmps = 4 * batch * 8 * e_pad * 4                    # in-kernel f32 partials
    return 2 * (data + mask + outs) + tmps              # x2: double buffering


def _seq_tile_candidates(seq_len):
    if seq_len % 128 != 0 or seq_len < 256:
        return [seq_len]
    # Never a single grid step when the sequence can be split: >=2 tiles lets
    # both v7x TensorCores share the "parallel" axis and gives the pipeline
    # something to overlap.
    return sorted((t for t in range(128, seq_len // 2 + 1, 128)
                   if seq_len % t == 0), reverse=True)


def _plan(seq_len, batch, experts, num_layers,
          rw_isz, em_isz, mask_isz, budget):
    """Choose (layers_per_call, tile_s)."""
    cands = _seq_tile_candidates(seq_len)
    desired_min_tile = min(512, max(cands))

    def fits(t, layers):
        return _block_bytes(t, layers, batch, experts,
                            rw_isz, em_isz, mask_isz) <= budget

    # Chunk layers across several pallas_calls rather than letting 2L
    # double-buffered inputs shrink the sequence tile below ~512.
    layers_per_call = num_layers
    while layers_per_call > 1 and not any(
            t >= desired_min_tile and fits(t, layers_per_call) for t in cands):
        layers_per_call -= 1

    fitting = [t for t in cands if fits(t, layers_per_call)]
    if fitting:
        even = [t for t in fitting if (seq_len // t) % 2 == 0]
        tile_s = max(even) if even else max(fitting)
    else:
        tile_s = min(cands)   # best effort; vmem_limit raised to match below
    return layers_per_call, tile_s


# ----------------------------------------------------------------------------
# Wrapper
# ----------------------------------------------------------------------------
def load_balancing_loss(router_weights_list, expert_mask_list, num_experts,
                        top_k, attention_mask=None):
    """router_weights_list / expert_mask_list: lists of [B, S, E] arrays.

    expert_mask may be stored as int8/bf16/f32 in HBM; router weights as
    bf16/f32.  All accumulation is in f32.
    """
    del top_k  # not used in the forward computation itself
    num_layers = len(router_weights_list)
    assert num_layers >= 1 and num_layers == len(expert_mask_list)
    batch, seq_len, experts = router_weights_list[0].shape

    rw_dtype = jnp.dtype(router_weights_list[0].dtype)
    em_dtype = jnp.dtype(expert_mask_list[0].dtype)
    compute_dtype = jnp.bfloat16 if rw_dtype == jnp.bfloat16 else jnp.float32

    if attention_mask is None:
        mask_f32 = jnp.ones((batch, seq_len), jnp.float32)
    else:
        mask_f32 = attention_mask.astype(jnp.float32)

    # Layer-invariant normalization, computed once outside the kernel.
    denom = jnp.sum(mask_f32, axis=1, keepdims=True)            # [B, 1]
    # Guard all-masked rows (intentional divergence: reference yields NaN).
    inv_denom = jnp.where(denom > 0, 1.0 / denom, 0.0)          # [B, 1]

    # Mask in the compute dtype so both MXU operands match (bf16 0/1 is exact).
    mask_b1s = mask_f32.astype(compute_dtype)[:, None, :]       # [B, 1, S]
    mask_isz = jnp.dtype(compute_dtype).itemsize

    budget, vmem_cap = _vmem_budget_bytes()
    layers_per_call, tile_s = _plan(
        seq_len, batch, experts, num_layers,
        rw_dtype.itemsize, em_dtype.itemsize, mask_isz, budget)
    num_tiles = seq_len // tile_s
    required = _block_bytes(tile_s, layers_per_call, batch, experts,
                            rw_dtype.itemsize, em_dtype.itemsize, mask_isz)
    vmem_limit = int(min(max(budget, required), vmem_cap))

    mask_spec = pl.BlockSpec((batch, 1, tile_s), lambda t: (0, 0, t))
    data_spec = pl.BlockSpec((batch, tile_s, experts), lambda t: (0, t, 0))
    out_spec = pl.BlockSpec((1, batch, experts), lambda t: (t, 0, 0))
    part_shape = jax.ShapeDtypeStruct((num_tiles, batch, experts), jnp.float32)

    tpe_sum = jnp.zeros((batch, experts), jnp.float32)
    rppe_sum = jnp.zeros((batch, experts), jnp.float32)
    for lo in range(0, num_layers, layers_per_call):
        hi = min(lo + layers_per_call, num_layers)
        rw_chunk = list(router_weights_list[lo:hi])
        em_chunk = list(expert_mask_list[lo:hi])
        nl = len(rw_chunk)
        kernel = functools.partial(_lb_loss_kernel, num_layers=nl)
        tpe_parts, rppe_parts = pl.pallas_call(
            kernel,
            grid=(num_tiles,),
            in_specs=[mask_spec] + [data_spec] * (2 * nl),
            out_specs=[out_spec, out_spec],
            out_shape=[part_shape, part_shape],
            compiler_params=pltpu.CompilerParams(
                dimension_semantics=("parallel",),
                vmem_limit_bytes=vmem_limit),
        )(mask_b1s, *rw_chunk, *em_chunk)
        tpe_sum = tpe_sum + tpe_parts.sum(axis=0)
        rppe_sum = rppe_sum + rppe_parts.sum(axis=0)

    # Tiny O(B*E) finalize in plain JAX (keeps the grid axis "parallel").
    inv_layers = 1.0 / num_layers
    tokens_per_expert = tpe_sum * inv_denom * inv_layers
    router_prob_per_expert = rppe_sum * inv_denom * inv_layers
    # TODO(synk): summarize_scalar per-expert stats are logging-only side
    # effects with no Pallas equivalent; omitted.
    return (float(num_experts) ** 2) * jnp.mean(
        router_prob_per_expert * tokens_per_expert)


# ----------------------------------------------------------------------------
# Pure-JAX reference and self-test
# ----------------------------------------------------------------------------
def _reference_loss(router_weights_list, expert_mask_list, num_experts,
                    attention_mask=None):
    num_layers = len(router_weights_list)
    batch, seq, experts = router_weights_list[0].shape
    tpe = jnp.zeros((batch, experts), jnp.float32)
    rppe = jnp.zeros((batch, experts), jnp.float32)
    for rw, em in zip(router_weights_list, expert_mask_list):
        rw = rw.astype(jnp.float32)
        em = em.astype(jnp.float32)
        if attention_mask is not None:
            ext = jnp.broadcast_to(attention_mask[:, :, None].astype(jnp.float32),
                                   em.shape)
            tpe += jnp.sum(em * ext, axis=1) / jnp.sum(ext, axis=1)
            rppe += jnp.sum(rw * ext, axis=1) / jnp.sum(ext, axis=1)
        else:
            tpe += jnp.mean(em, axis=1)
            rppe += jnp.mean(rw, axis=1)
    tpe /= num_layers
    rppe /= num_layers
    return num_experts ** 2 * jnp.mean(rppe * tpe)


def _make_moe_inputs(key, num_layers, batch, seq, num_experts, top_k,
                     dtype=jnp.float32):
    rw_list, em_list = [], []
    for _ in range(num_layers):
        key, k1 = jax.random.split(key)
        logits = jax.random.normal(k1, (batch, seq, num_experts), jnp.float32)
        probs = jax.nn.softmax(logits, axis=-1)
        rw_list.append(probs.astype(dtype))
        _, top_idx = jax.lax.top_k(logits, top_k)
        mask = jnp.sum(jax.nn.one_hot(top_idx, num_experts, dtype=jnp.float32),
                       axis=-2)
        em_list.append(mask.astype(dtype))
    return key, rw_list, em_list


if __name__ == "__main__":
    num_layers = 3
    batch = 2
    seq = 8
    num_experts = 4
    top_k = 2

    key = jax.random.PRNGKey(0)
    key, rw_f32, em_f32 = _make_moe_inputs(key, num_layers, batch, seq,
                                           num_experts, top_k, jnp.float32)

    key, k2 = jax.random.split(key)
    attention_mask = (jax.random.uniform(k2, (batch, seq)) > 0.2).astype(
        jnp.float32)
    attention_mask = attention_mask.at[:, 0].set(1.0)   # no all-zero rows

    # --- masked path, f32 inputs ------------------------------------------
    loss = jax.block_until_ready(
        load_balancing_loss(rw_f32, em_f32, num_experts, top_k,
                            attention_mask=attention_mask))
    ref = _reference_loss(rw_f32, em_f32, num_experts,
                          attention_mask=attention_mask)
    np.testing.assert_allclose(np.asarray(loss), np.asarray(ref),
                               rtol=1e-5, atol=1e-6)

    # --- attention_mask=None path -----------------------------------------
    loss_nm = jax.block_until_ready(
        load_balancing_loss(rw_f32, em_f32, num_experts, top_k,
                            attention_mask=None))
    ref_nm = _reference_loss(rw_f32, em_f32, num_experts, attention_mask=None)
    np.testing.assert_allclose(np.asarray(loss_nm), np.asarray(ref_nm),
                               rtol=1e-5, atol=1e-6)

    # --- bf16 router weights + int8 expert mask resident in HBM ------------
    rw_bf16 = [x.astype(jnp.bfloat16) for x in rw_f32]
    em_i8 = [x.astype(jnp.int8) for x in em_f32]
    loss_bf16 = jax.block_until_ready(
        load_balancing_loss(rw_bf16, em_i8, num_experts, top_k,
                            attention_mask=attention_mask))
    ref_bf16 = _reference_loss(rw_bf16, em_i8, num_experts,
                               attention_mask=attention_mask)
    np.testing.assert_allclose(np.asarray(loss_bf16), np.asarray(ref_bf16),
                               rtol=1e-4, atol=1e-5)

    # --- larger shape exercising the multi-tile (>=2, even) grid path ------
    big_L, big_B, big_S, big_E = 2, 2, 512, 8
    key, rw_big, em_big = _make_moe_inputs(key, big_L, big_B, big_S,
                                           big_E, 2, jnp.bfloat16)
    key, k3 = jax.random.split(key)
    big_mask = (jax.random.uniform(k3, (big_B, big_S)) > 0.1).astype(
        jnp.float32)
    big_mask = big_mask.at[:, 0].set(1.0)
    loss_big = jax.block_until_ready(
        load_balancing_loss(rw_big, em_big, big_E, 2,
                            attention_mask=big_mask))
    ref_big = _reference_loss(rw_big, em_big, big_E, attention_mask=big_mask)
    np.testing.assert_allclose(np.asarray(loss_big), np.asarray(ref_big),
                               rtol=1e-3, atol=1e-4)

    print("KERNEL_OK")
</pallas_src>

<mosaic_0001>
module attributes {stable_mosaic.version = 11 : i64} {
  func.func @_lb_loss_kernel(%arg0: i32, %arg1: memref<2x1x8xf32, #tpu.memory_space<vmem>>, %arg2: memref<2x8x4xf32, #tpu.memory_space<vmem>>, %arg3: memref<2x8x4xf32, #tpu.memory_space<vmem>>, %arg4: memref<2x8x4xf32, #tpu.memory_space<vmem>>, %arg5: memref<2x8x4xf32, #tpu.memory_space<vmem>>, %arg6: memref<2x8x4xf32, #tpu.memory_space<vmem>>, %arg7: memref<2x8x4xf32, #tpu.memory_space<vmem>>, %arg8: memref<1x2x4xf32, #tpu.memory_space<vmem>>, %arg9: memref<1x2x4xf32, #tpu.memory_space<vmem>>) attributes {dimension_semantics = [#tpu.dimension_semantics<parallel>], iteration_bounds = array<i64: 1>, scalar_prefetch = 0 : i64, scratch_operands = 0 : i64, tpu.core_type = #tpu.core_type<tc>, window_params = [{transform_indices = @transform_0, window_bounds = array<i64: 2, 1, 8>}, {transform_indices = @transform_1, window_bounds = array<i64: 2, 8, 4>}, {transform_indices = @transform_2, window_bounds = array<i64: 2, 8, 4>}, {transform_indices = @transform_3, window_bounds = array<i64: 2, 8, 4>}, {transform_indices = @transform_4, window_bounds = array<i64: 2, 8, 4>}, {transform_indices = @transform_5, window_bounds = array<i64: 2, 8, 4>}, {transform_indices = @transform_6, window_bounds = array<i64: 2, 8, 4>}, {transform_indices = @transform_7, window_bounds = array<i64: 1, 2, 4>}, {transform_indices = @transform_8, window_bounds = array<i64: 1, 2, 4>}]} {
    %c0 = arith.constant 0 : index
    %c0_0 = arith.constant 0 : index
    %c0_1 = arith.constant 0 : index
    %0 = vector.load %arg1[%c0, %c0_0, %c0_1] : memref<2x1x8xf32, #tpu.memory_space<vmem>>, vector<2x1x8xf32>
    %c0_2 = arith.constant 0 : index
    %c0_3 = arith.constant 0 : index
    %c0_4 = arith.constant 0 : index
    %1 = vector.load %arg5[%c0_2, %c0_3, %c0_4] : memref<2x8x4xf32, #tpu.memory_space<vmem>>, vector<2x8x4xf32>
    "tpu.trace_start"() <{level = 10 : i32, message = "bxs,bse->bxe"}> : () -> ()
    %cst = arith.constant dense<0.000000e+00> : vector<2x1x4xf32>
    %2 = tpu.matmul %0, %1, %cst {dimension_numbers = #tpu.dot_dimension_numbers<[2], [1], [1], [2], [0, 0, 0, 1, 1, 2], [0], [0]>} : vector<2x1x8xf32>, vector<2x8x4xf32>, vector<2x1x4xf32> -> vector<2x1x4xf32>
    "tpu.trace_stop"() : () -> ()
    %c0_5 = arith.constant 0 : index
    %c0_6 = arith.constant 0 : index
    %c0_7 = arith.constant 0 : index
    %3 = vector.load %arg2[%c0_5, %c0_6, %c0_7] : memref<2x8x4xf32, #tpu.memory_space<vmem>>, vector<2x8x4xf32>
    "tpu.trace_start"() <{level = 10 : i32, message = "bxs,bse->bxe"}> : () -> ()
    %cst_8 = arith.constant dense<0.000000e+00> : vector<2x1x4xf32>
    %4 = tpu.matmul %0, %3, %cst_8 {dimension_numbers = #tpu.dot_dimension_numbers<[2], [1], [1], [2], [0, 0, 0, 1, 1, 2], [0], [0]>} : vector<2x1x8xf32>, vector<2x8x4xf32>, vector<2x1x4xf32> -> vector<2x1x4xf32>
    "tpu.trace_stop"() : () -> ()
    %c0_9 = arith.constant 0 : index
    %c0_10 = arith.constant 0 : index
    %c0_11 = arith.constant 0 : index
    %5 = vector.load %arg6[%c0_9, %c0_10, %c0_11] : memref<2x8x4xf32, #tpu.memory_space<vmem>>, vector<2x8x4xf32>
    "tpu.trace_start"() <{level = 10 : i32, message = "bxs,bse->bxe"}> : () -> ()
    %cst_12 = arith.constant dense<0.000000e+00> : vector<2x1x4xf32>
    %6 = tpu.matmul %0, %5, %cst_12 {dimension_numbers = #tpu.dot_dimension_numbers<[2], [1], [1], [2], [0, 0, 0, 1, 1, 2], [0], [0]>} : vector<2x1x8xf32>, vector<2x8x4xf32>, vector<2x1x4xf32> -> vector<2x1x4xf32>
    "tpu.trace_stop"() : () -> ()
    %7 = arith.addf %2, %6 : vector<2x1x4xf32>
    %c0_13 = arith.constant 0 : index
    %c0_14 = arith.constant 0 : index
    %c0_15 = arith.constant 0 : index
    %8 = vector.load %arg3[%c0_13, %c0_14, %c0_15] : memref<2x8x4xf32, #tpu.memory_space<vmem>>, vector<2x8x4xf32>
    "tpu.trace_start"() <{level = 10 : i32, message = "bxs,bse->bxe"}> : () -> ()
    %cst_16 = arith.constant dense<0.000000e+00> : vector<2x1x4xf32>
    %9 = tpu.matmul %0, %8, %cst_16 {dimension_numbers = #tpu.dot_dimension_numbers<[2], [1], [1], [2], [0, 0, 0, 1, 1, 2], [0], [0]>} : vector<2x1x8xf32>, vector<2x8x4xf32>, vector<2x1x4xf32> -> vector<2x1x4xf32>
    "tpu.trace_stop"() : () -> ()
    %10 = arith.addf %4, %9 : vector<2x1x4xf32>
    %c0_17 = arith.constant 0 : index
    %c0_18 = arith.constant 0 : index
    %c0_19 = arith.constant 0 : index
    %11 = vector.load %arg7[%c0_17, %c0_18, %c0_19] : memref<2x8x4xf32, #tpu.memory_space<vmem>>, vector<2x8x4xf32>
    "tpu.trace_start"() <{level = 10 : i32, message = "bxs,bse->bxe"}> : () -> ()
    %cst_20 = arith.constant dense<0.000000e+00> : vector<2x1x4xf32>
    %12 = tpu.matmul %0, %11, %cst_20 {dimension_numbers = #tpu.dot_dimension_numbers<[2], [1], [1], [2], [0, 0, 0, 1, 1, 2], [0], [0]>} : vector<2x1x8xf32>, vector<2x8x4xf32>, vector<2x1x4xf32> -> vector<2x1x4xf32>
    "tpu.trace_stop"() : () -> ()
    %13 = arith.addf %7, %12 : vector<2x1x4xf32>
    %c0_21 = arith.constant 0 : index
    %c0_22 = arith.constant 0 : index
    %c0_23 = arith.constant 0 : index
    %14 = vector.load %arg4[%c0_21, %c0_22, %c0_23] : memref<2x8x4xf32, #tpu.memory_space<vmem>>, vector<2x8x4xf32>
    "tpu.trace_start"() <{level = 10 : i32, message = "bxs,bse->bxe"}> : () -> ()
    %cst_24 = arith.constant dense<0.000000e+00> : vector<2x1x4xf32>
    %15 = tpu.matmul %0, %14, %cst_24 {dimension_numbers = #tpu.dot_dimension_numbers<[2], [1], [1], [2], [0, 0, 0, 1, 1, 2], [0], [0]>} : vector<2x1x8xf32>, vector<2x8x4xf32>, vector<2x1x4xf32> -> vector<2x1x4xf32>
    "tpu.trace_stop"() : () -> ()
    %16 = arith.addf %10, %15 : vector<2x1x4xf32>
    %17 = vector.shape_cast %13 : vector<2x1x4xf32> to vector<2x4xf32>
    %c0_25 = arith.constant 0 : index
    %c0_26 = arith.constant 0 : index
    %c0_27 = arith.constant 0 : index
    %18 = vector.load %arg8[%c0_25, %c0_26, %c0_27] : memref<1x2x4xf32, #tpu.memory_space<vmem>>, vector<1x2x4xf32>
    %19 = vector.shape_cast %18 : vector<1x2x4xf32> to vector<2x4xf32>
    %20 = vector.shape_cast %17 : vector<2x4xf32> to vector<1x2x4xf32>
    tpu.vector_store %arg8[%c0_25, %c0_26, %c0_27], %20 {strides = array<i32>} : memref<1x2x4xf32, #tpu.memory_space<vmem>>, vector<1x2x4xf32>,
    %21 = vector.shape_cast %16 : vector<2x1x4xf32> to vector<2x4xf32>
    %c0_28 = arith.constant 0 : index
    %c0_29 = arith.constant 0 : index
    %c0_30 = arith.constant 0 : index
    %22 = vector.load %arg9[%c0_28, %c0_29, %c0_30] : memref<1x2x4xf32, #tpu.memory_space<vmem>>, vector<1x2x4xf32>
    %23 = vector.shape_cast %22 : vector<1x2x4xf32> to vector<2x4xf32>
    %24 = vector.shape_cast %21 : vector<2x4xf32> to vector<1x2x4xf32>
    tpu.vector_store %arg9[%c0_28, %c0_29, %c0_30], %24 {strides = array<i32>} : memref<1x2x4xf32, #tpu.memory_space<vmem>>, vector<1x2x4xf32>,
    return
  }
  func.func @transform_0(%arg0: i32) -> (i32, i32, i32) {
    %c0_i32 = arith.constant 0 : i32
    %c0_i32_0 = arith.constant 0 : i32
    %c0_i32_1 = arith.constant 0 : i32
    return %c0_i32, %c0_i32_0, %arg0 : i32, i32, i32
  }
  func.func @transform_1(%arg0: i32) -> (i32, i32, i32) {
    %c0_i32 = arith.constant 0 : i32
    %c0_i32_0 = arith.constant 0 : i32
    %c0_i32_1 = arith.constant 0 : i32
    return %c0_i32, %arg0, %c0_i32_0 : i32, i32, i32
  }
  func.func @transform_2(%arg0: i32) -> (i32, i32, i32) {
    %c0_i32 = arith.constant 0 : i32
    %c0_i32_0 = arith.constant 0 : i32
    %c0_i32_1 = arith.constant 0 : i32
    return %c0_i32, %arg0, %c0_i32_0 : i32, i32, i32
  }
  func.func @transform_3(%arg0: i32) -> (i32, i32, i32) {
    %c0_i32 = arith.constant 0 : i32
    %c0_i32_0 = arith.constant 0 : i32
    %c0_i32_1 = arith.constant 0 : i32
    return %c0_i32, %arg0, %c0_i32_0 : i32, i32, i32
  }
  func.func @transform_4(%arg0: i32) -> (i32, i32, i32) {
    %c0_i32 = arith.constant 0 : i32
    %c0_i32_0 = arith.constant 0 : i32
    %c0_i32_1 = arith.constant 0 : i32
    return %c0_i32, %arg0, %c0_i32_0 : i32, i32, i32
  }
  func.func @transform_5(%arg0: i32) -> (i32, i32, i32) {
    %c0_i32 = arith.constant 0 : i32
    %c0_i32_0 = arith.constant 0 : i32
    %c0_i32_1 = arith.constant 0 : i32
    return %c0_i32, %arg0, %c0_i32_0 : i32, i32, i32
  }
  func.func @transform_6(%arg0: i32) -> (i32, i32, i32) {
    %c0_i32 = arith.constant 0 : i32
    %c0_i32_0 = arith.constant 0 : i32
    %c0_i32_1 = arith.constant 0 : i32
    return %c0_i32, %arg0, %c0_i32_0 : i32, i32, i32
  }
  func.func @transform_7(%arg0: i32) -> (i32, i32, i32) {
    %c0_i32 = arith.constant 0 : i32
    %c0_i32_0 = arith.constant 0 : i32
    %c0_i32_1 = arith.constant 0 : i32
    return %arg0, %c0_i32, %c0_i32_0 : i32, i32, i32
  }
  func.func @transform_8(%arg0: i32) -> (i32, i32, i32) {
    %c0_i32 = arith.constant 0 : i32
    %c0_i32_0 = arith.constant 0 : i32
    %c0_i32_1 = arith.constant 0 : i32
    return %arg0, %c0_i32, %c0_i32_0 : i32, i32, i32
  }
}

</mosaic_0001>

<llo_original>
// kernel: tpu_custom_call.1
$region0: #{tpu_custom_call.1}
  #allocation0 [shape = 'u32[]', space=smem, size = 0x4, offset = 0x4, fixed_abs, tag = 'smem constant byte address 0x4 - core index']
  #allocation1 [shape = 'u32[144,128]{1,0:T(1,128)}', space=vmem, size = 0x12000, scoped, tag = 'internal scratch']
  %s0 = inlined_call_operand.vmem [shape: f32[2,1,8], index: 0, kind: input, shape index: {}]
  %s1 = inlined_call_operand.vmem [shape: f32[2,8,4], index: 1, kind: input, shape index: {}]
  %s2 = inlined_call_operand.vmem [shape: f32[2,8,4], index: 2, kind: input, shape index: {}]
  %s3 = inlined_call_operand.vmem [shape: f32[2,8,4], index: 3, kind: input, shape index: {}]
  %s4 = inlined_call_operand.vmem [shape: f32[2,8,4], index: 4, kind: input, shape index: {}]
  %s5 = inlined_call_operand.vmem [shape: f32[2,8,4], index: 5, kind: input, shape index: {}]
  %s6 = inlined_call_operand.vmem [shape: f32[2,8,4], index: 6, kind: input, shape index: {}]
  %s7 = inlined_call_operand.hbm [shape: f32[1,2,4], index: 7, kind: output, shape index: {0}]
  %s8 = inlined_call_operand.hbm [shape: f32[1,2,4], index: 8, kind: output, shape index: {1}]
  %9 = xla_tuple %s7, %s8
  %s10 = sld [smem:[#allocation0]]
  $region46: #{tpu_custom_call.1} parent=0
    _
  %s12 = ssub.s32 1, %s10
  %s13 = scalar_select 0, %s12, %s10
  $region1: #{tpu_custom_call.1} parent=0
    #allocation2 [shape = 'u8[1024]{0}', space=vmem, size = 0x400, scoped, tag = 'output window, operand 0, single buffered']
    #allocation3 [shape = 's32[1]{0}', space=sflag, size = 0x4, scoped, tag = 'scoped memory for tpu_custom_call.1']
    #allocation4 [shape = 'u8[1024]{0}', space=vmem, size = 0x400, scoped, tag = 'output window, operand 1, single buffered']
    #allocation5 [shape = 's32[1]{0}', space=sflag, size = 0x4, scoped, tag = 'scoped memory for tpu_custom_call.1']
    %14 = vsyncpa [#allocation3], 0
    %15 = vsyncpa [#allocation5], 0
    // Predicated region
    $region2: #{tpu_custom_call.1} parent=1 // pred_check
      _
    $region3: #{tpu_custom_call.1} parent=1 // pred_check_branch
      %17 = sbr.rel (0) target = $region5
    $region4: #{tpu_custom_call.1} parent=1 // pred_region
      _
    $region5: #{tpu_custom_call.1} parent=1 // pred_fallthru
      _
    // Predicated region
    $region6: #{tpu_custom_call.1} parent=1 // pred_check
      _
    $region7: #{tpu_custom_call.1} parent=1 // pred_check_branch
      %19 = sbr.rel (0) target = $region9
    $region8: #{tpu_custom_call.1} parent=1 // pred_region
      _
    $region9: #{tpu_custom_call.1} parent=1 // pred_fallthru
      _
    // Predicated region
    $region10: #{tpu_custom_call.1} parent=1 // pred_check
      _
    $region11: #{tpu_custom_call.1} parent=1 // pred_check_branch
      %21 = sbr.rel (0) target = $region13
    $region12: #{tpu_custom_call.1} parent=1 // pred_region
      _
    $region13: #{tpu_custom_call.1} parent=1 // pred_fallthru
      _
    // Predicated region
    $region14: #{tpu_custom_call.1} parent=1 // pred_check
      _
    $region15: #{tpu_custom_call.1} parent=1 // pred_check_branch
      %23 = sbr.rel (0) target = $region17
    $region16: #{tpu_custom_call.1} parent=1 // pred_region
      _
    $region17: #{tpu_custom_call.1} parent=1 // pred_fallthru
      _
    // Predicated region
    $region18: #{tpu_custom_call.1} parent=1 // pred_check
      _
    $region19: #{tpu_custom_call.1} parent=1 // pred_check_branch
      %25 = sbr.rel (0) target = $region21
    $region20: #{tpu_custom_call.1} parent=1 // pred_region
      _
    $region21: #{tpu_custom_call.1} parent=1 // pred_fallthru
      _
    // Predicated region
    $region22: #{tpu_custom_call.1} parent=1 // pred_check
      _
    $region23: #{tpu_custom_call.1} parent=1 // pred_check_branch
      %27 = sbr.rel (0) target = $region25
    $region24: #{tpu_custom_call.1} parent=1 // pred_region
      _
    $region25: #{tpu_custom_call.1} parent=1 // pred_fallthru
      _
    // Predicated region
    $region26: #{tpu_custom_call.1} parent=1 // pred_check
      _
    $region27: #{tpu_custom_call.1} parent=1 // pred_check_branch
      %29 = sbr.rel (0) target = $region29
    $region28: #{tpu_custom_call.1} parent=1 // pred_region
      _
    $region29: #{tpu_custom_call.1} parent=1 // pred_fallthru
      _
    %v30 = vld [vmem:[%s0] sm:$0x1]
    %v31 = vld [vmem:[%s0 + $0x1] sm:$0x1]
    %v32 = vld [vmem:[%s4] sm:$0xff]
    %v33 = vld [vmem:[%s4 + $0x8] sm:$0xff]
    %v34 = vld [vmem:[%s1] sm:$0xff]
    %v35 = vld [vmem:[%s1 + $0x8] sm:$0xff]
    %v36 = vld [vmem:[%s5] sm:$0xff]
    %v37 = vld [vmem:[%s5 + $0x8] sm:$0xff]
    %vm38 = vcmask 64512
    %v40 = vsel %vm38, %v30, 0
    %42 = vmatprep.subr.mxu0 0.0
    %43 = vmatpush1.msra.mxu0 %v36
    %44 = vmatprep.subr.mxu0 0.0
    %45 = vmatpush1.msra.mxu0 0.0
    %46 = vmatprep.subr.mxu0 0.0
    %47 = vmatpush1.msra.mxu0 0.0
    %48 = vmatprep.subr.mxu0 0.0
    %49 = vmatpush1.msra.mxu0 0.0
    %50 = vmatprep.subr.mxu0 0.0
    %51 = vmatpush1.msra.mxu0 0.0
    %52 = vmatprep.subr.mxu0 0.0
    %53 = vmatpush1.msra.mxu0 0.0
    %54 = vmatprep.subr.mxu0 0.0
    %55 = vmatpush1.msra.mxu0 0.0
    %56 = vmatprep.subr.mxu0 0.0
    %57 = vmatpush1.msra.mxu0 0.0
    %58 = vmatprep.subr.mxu0 0.0
    %59 = vmatpush1.msra.mxu0 0.0
    %60 = vmatprep.subr.mxu0 0.0
    %61 = vmatpush1.msra.mxu0 0.0
    %62 = vmatprep.subr.mxu0 0.0
    %63 = vmatpush1.msra.mxu0 0.0
    %64 = vmatprep.subr.mxu0 0.0
    %65 = vmatpush1.msra.mxu0 0.0
    %66 = vmatprep.subr.mxu0 0.0
    %67 = vmatpush1.msra.mxu0 0.0
    %68 = vmatprep.subr.mxu0 0.0
    %69 = vmatpush1.msra.mxu0 0.0
    %70 = vmatprep.subr.mxu0 0.0
    %71 = vmatpush1.msra.mxu0 0.0
    %72 = vmatprep.subr.mxu0 0.0
    %73 = vmatpush1.msra.mxu0 0.0
    %74 = vmatprep.subr.mxu0 0.0
    %75 = vmatpush1.msra.mxu0 0.0
    %76 = vmatprep.subr.mxu0 0.0
    %77 = vmatpush1.msra.mxu0 0.0
    %78 = vmatprep.subr.mxu0 0.0
    %79 = vmatpush1.msra.mxu0 0.0
    %80 = vmatprep.subr.mxu0 0.0
    %81 = vmatpush1.msra.mxu0 0.0
    %82 = vmatprep.subr.mxu0 0.0
    %83 = vmatpush1.msra.mxu0 0.0
    %84 = vmatprep.subr.mxu0 0.0
    %85 = vmatpush1.msra.mxu0 0.0
    %86 = vmatprep.subr.mxu0 0.0
    %87 = vmatpush1.msra.mxu0 0.0
    %88 = vmatprep.subr.mxu0 0.0
    %89 = vmatpush1.msra.mxu0 0.0
    %90 = vmatprep.subr.mxu0 0.0
    %91 = vmatpush1.msra.mxu0 0.0
    %92 = vmatprep.subr.mxu0 0.0
    %93 = vmatpush1.msra.mxu0 0.0
    %94 = vmatprep.subr.mxu0 0.0
    %95 = vmatpush1.msra.mxu0 0.0
    %96 = vmatprep.subr.mxu0 0.0
    %97 = vmatpush1.msra.mxu0 0.0
    %98 = vmatprep.subr.mxu0 0.0
    %99 = vmatpush1.msra.mxu0 0.0
    %100 = vmatprep.subr.mxu0 0.0
    %101 = vmatpush1.msra.mxu0 0.0
    %102 = vmatprep.subr.mxu0 0.0
    %103 = vmatpush1.msra.mxu0 0.0
    %104 = vmatprep.subr.mxu0 0.0
    %105 = vmatpush1.msra.mxu0 0.0
    %106 = vmatprep.mubr.f32.mxu0 0.0
    %107 = vmatmul.mubr.f32.gmra.mrb[0].mxu0 %v40
    %v108 = vpop.f32.mrb[0].mxu0
    %v109 = vadd.f32 0.0, %v108
    %v110 = vpop.f32.mrb[0].mxu0
    %111 = vdwg.mxu0
    %v113 = vsel %vm38, %v31, 0
    %115 = vmatprep.subr.mxu0 0.0
    %116 = vmatpush1.msra.mxu0 %v37
    %117 = vmatprep.subr.mxu0 0.0
    %118 = vmatpush1.msra.mxu0 0.0
    %119 = vmatprep.subr.mxu0 0.0
    %120 = vmatpush1.msra.mxu0 0.0
    %121 = vmatprep.subr.mxu0 0.0
    %122 = vmatpush1.msra.mxu0 0.0
    %123 = vmatprep.subr.mxu0 0.0
    %124 = vmatpush1.msra.mxu0 0.0
    %125 = vmatprep.subr.mxu0 0.0
    %126 = vmatpush1.msra.mxu0 0.0
    %127 = vmatprep.subr.mxu0 0.0
    %128 = vmatpush1.msra.mxu0 0.0
    %129 = vmatprep.subr.mxu0 0.0
    %130 = vmatpush1.msra.mxu0 0.0
    %131 = vmatprep.subr.mxu0 0.0
    %132 = vmatpush1.msra.mxu0 0.0
    %133 = vmatprep.subr.mxu0 0.0
    %134 = vmatpush1.msra.mxu0 0.0
    %135 = vmatprep.subr.mxu0 0.0
    %136 = vmatpush1.msra.mxu0 0.0
    %137 = vmatprep.subr.mxu0 0.0
    %138 = vmatpush1.msra.mxu0 0.0
    %139 = vmatprep.subr.mxu0 0.0
    %140 = vmatpush1.msra.mxu0 0.0
    %141 = vmatprep.subr.mxu0 0.0
    %142 = vmatpush1.msra.mxu0 0.0
    %143 = vmatprep.subr.mxu0 0.0
    %144 = vmatpush1.msra.mxu0 0.0
    %145 = vmatprep.subr.mxu0 0.0
    %146 = vmatpush1.msra.mxu0 0.0
    %147 = vmatprep.subr.mxu0 0.0
    %148 = vmatpush1.msra.mxu0 0.0
    %149 = vmatprep.subr.mxu0 0.0
    %150 = vmatpush1.msra.mxu0 0.0
    %151 = vmatprep.subr.mxu0 0.0
    %152 = vmatpush1.msra.mxu0 0.0
    %153 = vmatprep.subr.mxu0 0.0
    %154 = vmatpush1.msra.mxu0 0.0
    %155 = vmatprep.subr.mxu0 0.0
    %156 = vmatpush1.msra.mxu0 0.0
    %157 = vmatprep.subr.mxu0 0.0
    %158 = vmatpush1.msra.mxu0 0.0
    %159 = vmatprep.subr.mxu0 0.0
    %160 = vmatpush1.msra.mxu0 0.0
    %161 = vmatprep.subr.mxu0 0.0
    %162 = vmatpush1.msra.mxu0 0.0
    %163 = vmatprep.subr.mxu0 0.0
    %164 = vmatpush1.msra.mxu0 0.0
    %165 = vmatprep.subr.mxu0 0.0
    %166 = vmatpush1.msra.mxu0 0.0
    %167 = vmatprep.subr.mxu0 0.0
    %168 = vmatpush1.msra.mxu0 0.0
    %169 = vmatprep.subr.mxu0 0.0
    %170 = vmatpush1.msra.mxu0 0.0
    %171 = vmatprep.subr.mxu0 0.0
    %172 = vmatpush1.msra.mxu0 0.0
    %173 = vmatprep.subr.mxu0 0.0
    %174 = vmatpush1.msra.mxu0 0.0
    %175 = vmatprep.subr.mxu0 0.0
    %176 = vmatpush1.msra.mxu0 0.0
    %177 = vmatprep.subr.mxu0 0.0
    %178 = vmatpush1.msra.mxu0 0.0
    %179 = vmatprep.mubr.f32.mxu0 0.0
    %180 = vmatmul.mubr.f32.gmra.mrb[0].mxu0 %v113
    %v181 = vpop.f32.mrb[0].mxu0
    %v182 = vadd.f32 0.0, %v181
    %v183 = vpop.f32.mrb[0].mxu0
    %184 = vdwg.mxu0
    %185 = vmatprep.subr.mxu0 0.0
    %186 = vmatpush1.msra.mxu0 %v32
    %187 = vmatprep.subr.mxu0 0.0
    %188 = vmatpush1.msra.mxu0 0.0
    %189 = vmatprep.subr.mxu0 0.0
    %190 = vmatpush1.msra.mxu0 0.0
    %191 = vmatprep.subr.mxu0 0.0
    %192 = vmatpush1.msra.mxu0 0.0
    %193 = vmatprep.subr.mxu0 0.0
    %194 = vmatpush1.msra.mxu0 0.0
    %195 = vmatprep.subr.mxu0 0.0
    %196 = vmatpush1.msra.mxu0 0.0
    %197 = vmatprep.subr.mxu0 0.0
    %198 = vmatpush1.msra.mxu0 0.0
    %199 = vmatprep.subr.mxu0 0.0
    %200 = vmatpush1.msra.mxu0 0.0
    %201 = vmatprep.subr.mxu0 0.0
    %202 = vmatpush1.msra.mxu0 0.0
    %203 = vmatprep.subr.mxu0 0.0
    %204 = vmatpush1.msra.mxu0 0.0
    %205 = vmatprep.subr.mxu0 0.0
    %206 = vmatpush1.msra.mxu0 0.0
    %207 = vmatprep.subr.mxu0 0.0
    %208 = vmatpush1.msra.mxu0 0.0
    %209 = vmatprep.subr.mxu0 0.0
    %210 = vmatpush1.msra.mxu0 0.0
    %211 = vmatprep.subr.mxu0 0.0
    %212 = vmatpush1.msra.mxu0 0.0
    %213 = vmatprep.subr.mxu0 0.0
    %214 = vmatpush1.msra.mxu0 0.0
    %215 = vmatprep.subr.mxu0 0.0
    %216 = vmatpush1.msra.mxu0 0.0
    %217 = vmatprep.subr.mxu0 0.0
    %218 = vmatpush1.msra.mxu0 0.0
    %219 = vmatprep.subr.mxu0 0.0
    %220 = vmatpush1.msra.mxu0 0.0
    %221 = vmatprep.subr.mxu0 0.0
    %222 = vmatpush1.msra.mxu0 0.0
    %223 = vmatprep.subr.mxu0 0.0
    %224 = vmatpush1.msra.mxu0 0.0
    %225 = vmatprep.subr.mxu0 0.0
    %226 = vmatpush1.msra.mxu0 0.0
    %227 = vmatprep.subr.mxu0 0.0
    %228 = vmatpush1.msra.mxu0 0.0
    %229 = vmatprep.subr.mxu0 0.0
    %230 = vmatpush1.msra.mxu0 0.0
    %231 = vmatprep.subr.mxu0 0.0
    %232 = vmatpush1.msra.mxu0 0.0
    %233 = vmatprep.subr.mxu0 0.0
    %234 = vmatpush1.msra.mxu0 0.0
    %235 = vmatprep.subr.mxu0 0.0
    %236 = vmatpush1.msra.mxu0 0.0
    %237 = vmatprep.subr.mxu0 0.0
    %238 = vmatpush1.msra.mxu0 0.0
    %239 = vmatprep.subr.mxu0 0.0
    %240 = vmatpush1.msra.mxu0 0.0
    %241 = vmatprep.subr.mxu0 0.0
    %242 = vmatpush1.msra.mxu0 0.0
    %243 = vmatprep.subr.mxu0 0.0
    %244 = vmatpush1.msra.mxu0 0.0
    %245 = vmatprep.subr.mxu0 0.0
    %246 = vmatpush1.msra.mxu0 0.0
    %247 = vmatprep.subr.mxu0 0.0
    %248 = vmatpush1.msra.mxu0 0.0
    %249 = vmatprep.mubr.f32.mxu0 0.0
    %250 = vmatmul.mubr.f32.gmra.mrb[0].mxu0 %v40
    %v251 = vpop.f32.mrb[0].mxu0
    %v252 = vadd.f32 %v109, %v251
    %v253 = vpop.f32.mrb[0].mxu0
    %254 = vdwg.mxu0
    %255 = vmatprep.subr.mxu0 0.0
    %256 = vmatpush1.msra.mxu0 %v33
    %257 = vmatprep.subr.mxu0 0.0
    %258 = vmatpush1.msra.mxu0 0.0
    %259 = vmatprep.subr.mxu0 0.0
    %260 = vmatpush1.msra.mxu0 0.0
    %261 = vmatprep.subr.mxu0 0.0
    %262 = vmatpush1.msra.mxu0 0.0
    %263 = vmatprep.subr.mxu0 0.0
    %264 = vmatpush1.msra.mxu0 0.0
    %265 = vmatprep.subr.mxu0 0.0
    %266 = vmatpush1.msra.mxu0 0.0
    %267 = vmatprep.subr.mxu0 0.0
    %268 = vmatpush1.msra.mxu0 0.0
    %269 = vmatprep.subr.mxu0 0.0
    %270 = vmatpush1.msra.mxu0 0.0
    %271 = vmatprep.subr.mxu0 0.0
    %272 = vmatpush1.msra.mxu0 0.0
    %273 = vmatprep.subr.mxu0 0.0
    %274 = vmatpush1.msra.mxu0 0.0
    %275 = vmatprep.subr.mxu0 0.0
    %276 = vmatpush1.msra.mxu0 0.0
    %277 = vmatprep.subr.mxu0 0.0
    %278 = vmatpush1.msra.mxu0 0.0
    %279 = vmatprep.subr.mxu0 0.0
    %280 = vmatpush1.msra.mxu0 0.0
    %281 = vmatprep.subr.mxu0 0.0
    %282 = vmatpush1.msra.mxu0 0.0
    %283 = vmatprep.subr.mxu0 0.0
    %284 = vmatpush1.msra.mxu0 0.0
    %285 = vmatprep.subr.mxu0 0.0
    %286 = vmatpush1.msra.mxu0 0.0
    %287 = vmatprep.subr.mxu0 0.0
    %288 = vmatpush1.msra.mxu0 0.0
    %289 = vmatprep.subr.mxu0 0.0
    %290 = vmatpush1.msra.mxu0 0.0
    %291 = vmatprep.subr.mxu0 0.0
    %292 = vmatpush1.msra.mxu0 0.0
    %293 = vmatprep.subr.mxu0 0.0
    %294 = vmatpush1.msra.mxu0 0.0
    %295 = vmatprep.subr.mxu0 0.0
    %296 = vmatpush1.msra.mxu0 0.0
    %297 = vmatprep.subr.mxu0 0.0
    %298 = vmatpush1.msra.mxu0 0.0
    %299 = vmatprep.subr.mxu0 0.0
    %300 = vmatpush1.msra.mxu0 0.0
    %301 = vmatprep.subr.mxu0 0.0
    %302 = vmatpush1.msra.mxu0 0.0
    %303 = vmatprep.subr.mxu0 0.0
    %304 = vmatpush1.msra.mxu0 0.0
    %305 = vmatprep.subr.mxu0 0.0
    %306 = vmatpush1.msra.mxu0 0.0
    %307 = vmatprep.subr.mxu0 0.0
    %308 = vmatpush1.msra.mxu0 0.0
    %309 = vmatprep.subr.mxu0 0.0
    %310 = vmatpush1.msra.mxu0 0.0
    %311 = vmatprep.subr.mxu0 0.0
    %312 = vmatpush1.msra.mxu0 0.0
    %313 = vmatprep.subr.mxu0 0.0
    %314 = vmatpush1.msra.mxu0 0.0
    %315 = vmatprep.subr.mxu0 0.0
    %316 = vmatpush1.msra.mxu0 0.0
    %317 = vmatprep.subr.mxu0 0.0
    %318 = vmatpush1.msra.mxu0 0.0
    %319 = vmatprep.mubr.f32.mxu0 0.0
    %320 = vmatmul.mubr.f32.gmra.mrb[0].mxu0 %v113
    %v321 = vpop.f32.mrb[0].mxu0
    %v322 = vadd.f32 %v182, %v321
    %v323 = vpop.f32.mrb[0].mxu0
    %324 = vdwg.mxu0
    %v325 = vld [vmem:[%s2] sm:$0xff]
    %v326 = vld [vmem:[%s2 + $0x8] sm:$0xff]
    %327 = vmatprep.subr.mxu0 0.0
    %328 = vmatpush1.msra.mxu0 %v325
    %329 = vmatprep.subr.mxu0 0.0
    %330 = vmatpush1.msra.mxu0 0.0
    %331 = vmatprep.subr.mxu0 0.0
    %332 = vmatpush1.msra.mxu0 0.0
    %333 = vmatprep.subr.mxu0 0.0
    %334 = vmatpush1.msra.mxu0 0.0
    %335 = vmatprep.subr.mxu0 0.0
    %336 = vmatpush1.msra.mxu0 0.0
    %337 = vmatprep.subr.mxu0 0.0
    %338 = vmatpush1.msra.mxu0 0.0
    %339 = vmatprep.subr.mxu0 0.0
    %340 = vmatpush1.msra.mxu0 0.0
    %341 = vmatprep.subr.mxu0 0.0
    %342 = vmatpush1.msra.mxu0 0.0
    %343 = vmatprep.subr.mxu0 0.0
    %344 = vmatpush1.msra.mxu0 0.0
    %345 = vmatprep.subr.mxu0 0.0
    %346 = vmatpush1.msra.mxu0 0.0
    %347 = vmatprep.subr.mxu0 0.0
    %348 = vmatpush1.msra.mxu0 0.0
    %349 = vmatprep.subr.mxu0 0.0
    %350 = vmatpush1.msra.mxu0 0.0
    %351 = vmatprep.subr.mxu0 0.0
    %352 = vmatpush1.msra.mxu0 0.0
    %353 = vmatprep.subr.mxu0 0.0
    %354 = vmatpush1.msra.mxu0 0.0
    %355 = vmatprep.subr.mxu0 0.0
    %356 = vmatpush1.msra.mxu0 0.0
    %357 = vmatprep.subr.mxu0 0.0
    %358 = vmatpush1.msra.mxu0 0.0
    %359 = vmatprep.subr.mxu0 0.0
    %360 = vmatpush1.msra.mxu0 0.0
    %361 = vmatprep.subr.mxu0 0.0
    %362 = vmatpush1.msra.mxu0 0.0
    %363 = vmatprep.subr.mxu0 0.0
    %364 = vmatpush1.msra.mxu0 0.0
    %365 = vmatprep.subr.mxu0 0.0
    %366 = vmatpush1.msra.mxu0 0.0
    %367 = vmatprep.subr.mxu0 0.0
    %368 = vmatpush1.msra.mxu0 0.0
    %369 = vmatprep.subr.mxu0 0.0
    %370 = vmatpush1.msra.mxu0 0.0
    %371 = vmatprep.subr.mxu0 0.0
    %372 = vmatpush1.msra.mxu0 0.0
    %373 = vmatprep.subr.mxu0 0.0
    %374 = vmatpush1.msra.mxu0 0.0
    %375 = vmatprep.subr.mxu0 0.0
    %376 = vmatpush1.msra.mxu0 0.0
    %377 = vmatprep.subr.mxu0 0.0
    %378 = vmatpush1.msra.mxu0 0.0
    %379 = vmatprep.subr.mxu0 0.0
    %380 = vmatpush1.msra.mxu0 0.0
    %381 = vmatprep.subr.mxu0 0.0
    %382 = vmatpush1.msra.mxu0 0.0
    %383 = vmatprep.subr.mxu0 0.0
    %384 = vmatpush1.msra.mxu0 0.0
    %385 = vmatprep.subr.mxu0 0.0
    %386 = vmatpush1.msra.mxu0 0.0
    %387 = vmatprep.subr.mxu0 0.0
    %388 = vmatpush1.msra.mxu0 0.0
    %389 = vmatprep.subr.mxu0 0.0
    %390 = vmatpush1.msra.mxu0 0.0
    %391 = vmatprep.mubr.f32.mxu0 0.0
    %392 = vmatmul.mubr.f32.gmra.mrb[0].mxu0 %v40
    %v393 = vpop.f32.mrb[0].mxu0
    %v394 = vadd.f32 0.0, %v393
    %v395 = vpop.f32.mrb[0].mxu0
    %396 = vdwg.mxu0
    %397 = vmatprep.subr.mxu0 0.0
    %398 = vmatpush1.msra.mxu0 %v326
    %399 = vmatprep.subr.mxu0 0.0
    %400 = vmatpush1.msra.mxu0 0.0
    %401 = vmatprep.subr.mxu0 0.0
    %402 = vmatpush1.msra.mxu0 0.0
    %403 = vmatprep.subr.mxu0 0.0
    %404 = vmatpush1.msra.mxu0 0.0
    %405 = vmatprep.subr.mxu0 0.0
    %406 = vmatpush1.msra.mxu0 0.0
    %407 = vmatprep.subr.mxu0 0.0
    %408 = vmatpush1.msra.mxu0 0.0
    %409 = vmatprep.subr.mxu0 0.0
    %410 = vmatpush1.msra.mxu0 0.0
    %411 = vmatprep.subr.mxu0 0.0
    %412 = vmatpush1.msra.mxu0 0.0
    %413 = vmatprep.subr.mxu0 0.0
    %414 = vmatpush1.msra.mxu0 0.0
    %415 = vmatprep.subr.mxu0 0.0
    %416 = vmatpush1.msra.mxu0 0.0
    %417 = vmatprep.subr.mxu0 0.0
    %418 = vmatpush1.msra.mxu0 0.0
    %419 = vmatprep.subr.mxu0 0.0
    %420 = vmatpush1.msra.mxu0 0.0
    %421 = vmatprep.subr.mxu0 0.0
    %422 = vmatpush1.msra.mxu0 0.0
    %423 = vmatprep.subr.mxu0 0.0
    %424 = vmatpush1.msra.mxu0 0.0
    %425 = vmatprep.subr.mxu0 0.0
    %426 = vmatpush1.msra.mxu0 0.0
    %427 = vmatprep.subr.mxu0 0.0
    %428 = vmatpush1.msra.mxu0 0.0
    %429 = vmatprep.subr.mxu0 0.0
    %430 = vmatpush1.msra.mxu0 0.0
    %431 = vmatprep.subr.mxu0 0.0
    %432 = vmatpush1.msra.mxu0 0.0
    %433 = vmatprep.subr.mxu0 0.0
    %434 = vmatpush1.msra.mxu0 0.0
    %435 = vmatprep.subr.mxu0 0.0
    %436 = vmatpush1.msra.mxu0 0.0
    %437 = vmatprep.subr.mxu0 0.0
    %438 = vmatpush1.msra.mxu0 0.0
    %439 = vmatprep.subr.mxu0 0.0
    %440 = vmatpush1.msra.mxu0 0.0
    %441 = vmatprep.subr.mxu0 0.0
    %442 = vmatpush1.msra.mxu0 0.0
    %443 = vmatprep.subr.mxu0 0.0
    %444 = vmatpush1.msra.mxu0 0.0
    %445 = vmatprep.subr.mxu0 0.0
    %446 = vmatpush1.msra.mxu0 0.0
    %447 = vmatprep.subr.mxu0 0.0
    %448 = vmatpush1.msra.mxu0 0.0
    %449 = vmatprep.subr.mxu0 0.0
    %450 = vmatpush1.msra.mxu0 0.0
    %451 = vmatprep.subr.mxu0 0.0
    %452 = vmatpush1.msra.mxu0 0.0
    %453 = vmatprep.subr.mxu0 0.0
    %454 = vmatpush1.msra.mxu0 0.0
    %455 = vmatprep.subr.mxu0 0.0
    %456 = vmatpush1.msra.mxu0 0.0
    %457 = vmatprep.subr.mxu0 0.0
    %458 = vmatpush1.msra.mxu0 0.0
    %459 = vmatprep.subr.mxu0 0.0
    %460 = vmatpush1.msra.mxu0 0.0
    %461 = vmatprep.mubr.f32.mxu0 0.0
    %462 = vmatmul.mubr.f32.gmra.mrb[0].mxu0 %v113
    %v463 = vpop.f32.mrb[0].mxu0
    %v464 = vadd.f32 0.0, %v463
    %v465 = vpop.f32.mrb[0].mxu0
    %466 = vdwg.mxu0
    %467 = vmatprep.subr.mxu0 0.0
    %468 = vmatpush1.msra.mxu0 %v34
    %469 = vmatprep.subr.mxu0 0.0
    %470 = vmatpush1.msra.mxu0 0.0
    %471 = vmatprep.subr.mxu0 0.0
    %472 = vmatpush1.msra.mxu0 0.0
    %473 = vmatprep.subr.mxu0 0.0
    %474 = vmatpush1.msra.mxu0 0.0
    %475 = vmatprep.subr.mxu0 0.0
    %476 = vmatpush1.msra.mxu0 0.0
    %477 = vmatprep.subr.mxu0 0.0
    %478 = vmatpush1.msra.mxu0 0.0
    %479 = vmatprep.subr.mxu0 0.0
    %480 = vmatpush1.msra.mxu0 0.0
    %481 = vmatprep.subr.mxu0 0.0
    %482 = vmatpush1.msra.mxu0 0.0
    %483 = vmatprep.subr.mxu0 0.0
    %484 = vmatpush1.msra.mxu0 0.0
    %485 = vmatprep.subr.mxu0 0.0
    %486 = vmatpush1.msra.mxu0 0.0
    %487 = vmatprep.subr.mxu0 0.0
    %488 = vmatpush1.msra.mxu0 0.0
    %489 = vmatprep.subr.mxu0 0.0
    %490 = vmatpush1.msra.mxu0 0.0
    %491 = vmatprep.subr.mxu0 0.0
    %492 = vmatpush1.msra.mxu0 0.0
    %493 = vmatprep.subr.mxu0 0.0
    %494 = vmatpush1.msra.mxu0 0.0
    %495 = vmatprep.subr.mxu0 0.0
    %496 = vmatpush1.msra.mxu0 0.0
    %497 = vmatprep.subr.mxu0 0.0
    %498 = vmatpush1.msra.mxu0 0.0
    %499 = vmatprep.subr.mxu0 0.0
    %500 = vmatpush1.msra.mxu0 0.0
    %501 = vmatprep.subr.mxu0 0.0
    %502 = vmatpush1.msra.mxu0 0.0
    %503 = vmatprep.subr.mxu0 0.0
    %504 = vmatpush1.msra.mxu0 0.0
    %505 = vmatprep.subr.mxu0 0.0
    %506 = vmatpush1.msra.mxu0 0.0
    %507 = vmatprep.subr.mxu0 0.0
    %508 = vmatpush1.msra.mxu0 0.0
    %509 = vmatprep.subr.mxu0 0.0
    %510 = vmatpush1.msra.mxu0 0.0
    %511 = vmatprep.subr.mxu0 0.0
    %512 = vmatpush1.msra.mxu0 0.0
    %513 = vmatprep.subr.mxu0 0.0
    %514 = vmatpush1.msra.mxu0 0.0
    %515 = vmatprep.subr.mxu0 0.0
    %516 = vmatpush1.msra.mxu0 0.0
    %517 = vmatprep.subr.mxu0 0.0
    %518 = vmatpush1.msra.mxu0 0.0
    %519 = vmatprep.subr.mxu0 0.0
    %520 = vmatpush1.msra.mxu0 0.0
    %521 = vmatprep.subr.mxu0 0.0
    %522 = vmatpush1.msra.mxu0 0.0
    %523 = vmatprep.subr.mxu0 0.0
    %524 = vmatpush1.msra.mxu0 0.0
    %525 = vmatprep.subr.mxu0 0.0
    %526 = vmatpush1.msra.mxu0 0.0
    %527 = vmatprep.subr.mxu0 0.0
    %528 = vmatpush1.msra.mxu0 0.0
    %529 = vmatprep.subr.mxu0 0.0
    %530 = vmatpush1.msra.mxu0 0.0
    %531 = vmatprep.mubr.f32.mxu0 0.0
    %532 = vmatmul.mubr.f32.gmra.mrb[0].mxu0 %v40
    %v533 = vpop.f32.mrb[0].mxu0
    %v534 = vadd.f32 %v394, %v533
    %v535 = vpop.f32.mrb[0].mxu0
    %536 = vdwg.mxu0
    %537 = vmatprep.subr.mxu0 0.0
    %538 = vmatpush1.msra.mxu0 %v35
    %539 = vmatprep.subr.mxu0 0.0
    %540 = vmatpush1.msra.mxu0 0.0
    %541 = vmatprep.subr.mxu0 0.0
    %542 = vmatpush1.msra.mxu0 0.0
    %543 = vmatprep.subr.mxu0 0.0
    %544 = vmatpush1.msra.mxu0 0.0
    %545 = vmatprep.subr.mxu0 0.0
    %546 = vmatpush1.msra.mxu0 0.0
    %547 = vmatprep.subr.mxu0 0.0
    %548 = vmatpush1.msra.mxu0 0.0
    %549 = vmatprep.subr.mxu0 0.0
    %550 = vmatpush1.msra.mxu0 0.0
    %551 = vmatprep.subr.mxu0 0.0
    %552 = vmatpush1.msra.mxu0 0.0
    %553 = vmatprep.subr.mxu0 0.0
    %554 = vmatpush1.msra.mxu0 0.0
    %555 = vmatprep.subr.mxu0 0.0
    %556 = vmatpush1.msra.mxu0 0.0
    %557 = vmatprep.subr.mxu0 0.0
    %558 = vmatpush1.msra.mxu0 0.0
    %559 = vmatprep.subr.mxu0 0.0
    %560 = vmatpush1.msra.mxu0 0.0
    %561 = vmatprep.subr.mxu0 0.0
    %562 = vmatpush1.msra.mxu0 0.0
    %563 = vmatprep.subr.mxu0 0.0
    %564 = vmatpush1.msra.mxu0 0.0
    %565 = vmatprep.subr.mxu0 0.0
    %566 = vmatpush1.msra.mxu0 0.0
    %567 = vmatprep.subr.mxu0 0.0
    %568 = vmatpush1.msra.mxu0 0.0
    %569 = vmatprep.subr.mxu0 0.0
    %570 = vmatpush1.msra.mxu0 0.0
    %571 = vmatprep.subr.mxu0 0.0
    %572 = vmatpush1.msra.mxu0 0.0
    %573 = vmatprep.subr.mxu0 0.0
    %574 = vmatpush1.msra.mxu0 0.0
    %575 = vmatprep.subr.mxu0 0.0
    %576 = vmatpush1.msra.mxu0 0.0
    %577 = vmatprep.subr.mxu0 0.0
    %578 = vmatpush1.msra.mxu0 0.0
    %579 = vmatprep.subr.mxu0 0.0
    %580 = vmatpush1.msra.mxu0 0.0
    %581 = vmatprep.subr.mxu0 0.0
    %582 = vmatpush1.msra.mxu0 0.0
    %583 = vmatprep.subr.mxu0 0.0
    %584 = vmatpush1.msra.mxu0 0.0
    %585 = vmatprep.subr.mxu0 0.0
    %586 = vmatpush1.msra.mxu0 0.0
    %587 = vmatprep.subr.mxu0 0.0
    %588 = vmatpush1.msra.mxu0 0.0
    %589 = vmatprep.subr.mxu0 0.0
    %590 = vmatpush1.msra.mxu0 0.0
    %591 = vmatprep.subr.mxu0 0.0
    %592 = vmatpush1.msra.mxu0 0.0
    %593 = vmatprep.subr.mxu0 0.0
    %594 = vmatpush1.msra.mxu0 0.0
    %595 = vmatprep.subr.mxu0 0.0
    %596 = vmatpush1.msra.mxu0 0.0
    %597 = vmatprep.subr.mxu0 0.0
    %598 = vmatpush1.msra.mxu0 0.0
    %599 = vmatprep.subr.mxu0 0.0
    %600 = vmatpush1.msra.mxu0 0.0
    %601 = vmatprep.mubr.f32.mxu0 0.0
    %602 = vmatmul.mubr.f32.gmra.mrb[0].mxu0 %v113
    %v603 = vpop.f32.mrb[0].mxu0
    %v604 = vadd.f32 %v464, %v603
    %v605 = vpop.f32.mrb[0].mxu0
    %606 = vdwg.mxu0
    %v607 = vld [vmem:[%s6] sm:$0xff]
    %v608 = vld [vmem:[%s6 + $0x8] sm:$0xff]
    %609 = vmatprep.subr.mxu0 0.0
    %610 = vmatpush1.msra.mxu0 %v607
    %611 = vmatprep.subr.mxu0 0.0
    %612 = vmatpush1.msra.mxu0 0.0
    %613 = vmatprep.subr.mxu0 0.0
    %614 = vmatpush1.msra.mxu0 0.0
    %615 = vmatprep.subr.mxu0 0.0
    %616 = vmatpush1.msra.mxu0 0.0
    %617 = vmatprep.subr.mxu0 0.0
    %618 = vmatpush1.msra.mxu0 0.0
    %619 = vmatprep.subr.mxu0 0.0
    %620 = vmatpush1.msra.mxu0 0.0
    %621 = vmatprep.subr.mxu0 0.0
    %622 = vmatpush1.msra.mxu0 0.0
    %623 = vmatprep.subr.mxu0 0.0
    %624 = vmatpush1.msra.mxu0 0.0
    %625 = vmatprep.subr.mxu0 0.0
    %626 = vmatpush1.msra.mxu0 0.0
    %627 = vmatprep.subr.mxu0 0.0
    %628 = vmatpush1.msra.mxu0 0.0
    %629 = vmatprep.subr.mxu0 0.0
    %630 = vmatpush1.msra.mxu0 0.0
    %631 = vmatprep.subr.mxu0 0.0
    %632 = vmatpush1.msra.mxu0 0.0
    %633 = vmatprep.subr.mxu0 0.0
    %634 = vmatpush1.msra.mxu0 0.0
    %635 = vmatprep.subr.mxu0 0.0
    %636 = vmatpush1.msra.mxu0 0.0
    %637 = vmatprep.subr.mxu0 0.0
    %638 = vmatpush1.msra.mxu0 0.0
    %639 = vmatprep.subr.mxu0 0.0
    %640 = vmatpush1.msra.mxu0 0.0
    %641 = vmatprep.subr.mxu0 0.0
    %642 = vmatpush1.msra.mxu0 0.0
    %643 = vmatprep.subr.mxu0 0.0
    %644 = vmatpush1.msra.mxu0 0.0
    %645 = vmatprep.subr.mxu0 0.0
    %646 = vmatpush1.msra.mxu0 0.0
    %647 = vmatprep.subr.mxu0 0.0
    %648 = vmatpush1.msra.mxu0 0.0
    %649 = vmatprep.subr.mxu0 0.0
    %650 = vmatpush1.msra.mxu0 0.0
    %651 = vmatprep.subr.mxu0 0.0
    %652 = vmatpush1.msra.mxu0 0.0
    %653 = vmatprep.subr.mxu0 0.0
    %654 = vmatpush1.msra.mxu0 0.0
    %655 = vmatprep.subr.mxu0 0.0
    %656 = vmatpush1.msra.mxu0 0.0
    %657 = vmatprep.subr.mxu0 0.0
    %658 = vmatpush1.msra.mxu0 0.0
    %659 = vmatprep.subr.mxu0 0.0
    %660 = vmatpush1.msra.mxu0 0.0
    %661 = vmatprep.subr.mxu0 0.0
    %662 = vmatpush1.msra.mxu0 0.0
    %663 = vmatprep.subr.mxu0 0.0
    %664 = vmatpush1.msra.mxu0 0.0
    %665 = vmatprep.subr.mxu0 0.0
    %666 = vmatpush1.msra.mxu0 0.0
    %667 = vmatprep.subr.mxu0 0.0
    %668 = vmatpush1.msra.mxu0 0.0
    %669 = vmatprep.subr.mxu0 0.0
    %670 = vmatpush1.msra.mxu0 0.0
    %671 = vmatprep.subr.mxu0 0.0
    %672 = vmatpush1.msra.mxu0 0.0
    %673 = vmatprep.mubr.f32.mxu0 0.0
    %674 = vmatmul.mubr.f32.gmra.mrb[0].mxu0 %v40
    %v675 = vpop.f32.mrb[0].mxu0
    %v676 = vadd.f32 0.0, %v675
    %v677 = vpop.f32.mrb[0].mxu0
    %678 = vdwg.mxu0
    %679 = vmatprep.subr.mxu0 0.0
    %680 = vmatpush1.msra.mxu0 %v608
    %681 = vmatprep.subr.mxu0 0.0
    %682 = vmatpush1.msra.mxu0 0.0
    %683 = vmatprep.subr.mxu0 0.0
    %684 = vmatpush1.msra.mxu0 0.0
    %685 = vmatprep.subr.mxu0 0.0
    %686 = vmatpush1.msra.mxu0 0.0
    %687 = vmatprep.subr.mxu0 0.0
    %688 = vmatpush1.msra.mxu0 0.0
    %689 = vmatprep.subr.mxu0 0.0
    %690 = vmatpush1.msra.mxu0 0.0
    %691 = vmatprep.subr.mxu0 0.0
    %692 = vmatpush1.msra.mxu0 0.0
    %693 = vmatprep.subr.mxu0 0.0
    %694 = vmatpush1.msra.mxu0 0.0
    %695 = vmatprep.subr.mxu0 0.0
    %696 = vmatpush1.msra.mxu0 0.0
    %697 = vmatprep.subr.mxu0 0.0
    %698 = vmatpush1.msra.mxu0 0.0
    %699 = vmatprep.subr.mxu0 0.0
    %700 = vmatpush1.msra.mxu0 0.0
    %701 = vmatprep.subr.mxu0 0.0
    %702 = vmatpush1.msra.mxu0 0.0
    %703 = vmatprep.subr.mxu0 0.0
    %704 = vmatpush1.msra.mxu0 0.0
    %705 = vmatprep.subr.mxu0 0.0
    %706 = vmatpush1.msra.mxu0 0.0
    %707 = vmatprep.subr.mxu0 0.0
    %708 = vmatpush1.msra.mxu0 0.0
    %709 = vmatprep.subr.mxu0 0.0
    %710 = vmatpush1.msra.mxu0 0.0
    %711 = vmatprep.subr.mxu0 0.0
    %712 = vmatpush1.msra.mxu0 0.0
    %713 = vmatprep.subr.mxu0 0.0
    %714 = vmatpush1.msra.mxu0 0.0
    %715 = vmatprep.subr.mxu0 0.0
    %716 = vmatpush1.msra.mxu0 0.0
    %717 = vmatprep.subr.mxu0 0.0
    %718 = vmatpush1.msra.mxu0 0.0
    %719 = vmatprep.subr.mxu0 0.0
    %720 = vmatpush1.msra.mxu0 0.0
    %721 = vmatprep.subr.mxu0 0.0
    %722 = vmatpush1.msra.mxu0 0.0
    %723 = vmatprep.subr.mxu0 0.0
    %724 = vmatpush1.msra.mxu0 0.0
    %725 = vmatprep.subr.mxu0 0.0
    %726 = vmatpush1.msra.mxu0 0.0
    %727 = vmatprep.subr.mxu0 0.0
    %728 = vmatpush1.msra.mxu0 0.0
    %729 = vmatprep.subr.mxu0 0.0
    %730 = vmatpush1.msra.mxu0 0.0
    %731 = vmatprep.subr.mxu0 0.0
    %732 = vmatpush1.msra.mxu0 0.0
    %733 = vmatprep.subr.mxu0 0.0
    %734 = vmatpush1.msra.mxu0 0.0
    %735 = vmatprep.subr.mxu0 0.0
    %736 = vmatpush1.msra.mxu0 0.0
    %737 = vmatprep.subr.mxu0 0.0
    %738 = vmatpush1.msra.mxu0 0.0
    %739 = vmatprep.subr.mxu0 0.0
    %740 = vmatpush1.msra.mxu0 0.0
    %741 = vmatprep.subr.mxu0 0.0
    %742 = vmatpush1.msra.mxu0 0.0
    %743 = vmatprep.mubr.f32.mxu0 0.0
    %744 = vmatmul.mubr.f32.gmra.mrb[0].mxu0 %v113
    %v745 = vpop.f32.mrb[0].mxu0
    %v746 = vadd.f32 0.0, %v745
    %v747 = vpop.f32.mrb[0].mxu0
    %748 = vdwg.mxu0
    %v749 = vadd.f32 %v252, %v676
    %v750 = vadd.f32 %v322, %v746
    %v751 = vld [vmem:[%s3] sm:$0xff]
    %v752 = vld [vmem:[%s3 + $0x8] sm:$0xff]
    %753 = vmatprep.subr.mxu0 0.0
    %754 = vmatpush1.msra.mxu0 %v751
    %755 = vmatprep.subr.mxu0 0.0
    %756 = vmatpush1.msra.mxu0 0.0
    %757 = vmatprep.subr.mxu0 0.0
    %758 = vmatpush1.msra.mxu0 0.0
    %759 = vmatprep.subr.mxu0 0.0
    %760 = vmatpush1.msra.mxu0 0.0
    %761 = vmatprep.subr.mxu0 0.0
    %762 = vmatpush1.msra.mxu0 0.0
    %763 = vmatprep.subr.mxu0 0.0
    %764 = vmatpush1.msra.mxu0 0.0
    %765 = vmatprep.subr.mxu0 0.0
    %766 = vmatpush1.msra.mxu0 0.0
    %767 = vmatprep.subr.mxu0 0.0
    %768 = vmatpush1.msra.mxu0 0.0
    %769 = vmatprep.subr.mxu0 0.0
    %770 = vmatpush1.msra.mxu0 0.0
    %771 = vmatprep.subr.mxu0 0.0
    %772 = vmatpush1.msra.mxu0 0.0
    %773 = vmatprep.subr.mxu0 0.0
    %774 = vmatpush1.msra.mxu0 0.0
    %775 = vmatprep.subr.mxu0 0.0
    %776 = vmatpush1.msra.mxu0 0.0
    %777 = vmatprep.subr.mxu0 0.0
    %778 = vmatpush1.msra.mxu0 0.0
    %779 = vmatprep.subr.mxu0 0.0
    %780 = vmatpush1.msra.mxu0 0.0
    %781 = vmatprep.subr.mxu0 0.0
    %782 = vmatpush1.msra.mxu0 0.0
    %783 = vmatprep.subr.mxu0 0.0
    %784 = vmatpush1.msra.mxu0 0.0
    %785 = vmatprep.subr.mxu0 0.0
    %786 = vmatpush1.msra.mxu0 0.0
    %787 = vmatprep.subr.mxu0 0.0
    %788 = vmatpush1.msra.mxu0 0.0
    %789 = vmatprep.subr.mxu0 0.0
    %790 = vmatpush1.msra.mxu0 0.0
    %791 = vmatprep.subr.mxu0 0.0
    %792 = vmatpush1.msra.mxu0 0.0
    %793 = vmatprep.subr.mxu0 0.0
    %794 = vmatpush1.msra.mxu0 0.0
    %795 = vmatprep.subr.mxu0 0.0
    %796 = vmatpush1.msra.mxu0 0.0
    %797 = vmatprep.subr.mxu0 0.0
    %798 = vmatpush1.msra.mxu0 0.0
    %799 = vmatprep.subr.mxu0 0.0
    %800 = vmatpush1.msra.mxu0 0.0
    %801 = vmatprep.subr.mxu0 0.0
    %802 = vmatpush1.msra.mxu0 0.0
    %803 = vmatprep.subr.mxu0 0.0
    %804 = vmatpush1.msra.mxu0 0.0
    %805 = vmatprep.subr.mxu0 0.0
    %806 = vmatpush1.msra.mxu0 0.0
    %807 = vmatprep.subr.mxu0 0.0
    %808 = vmatpush1.msra.mxu0 0.0
    %809 = vmatprep.subr.mxu0 0.0
    %810 = vmatpush1.msra.mxu0 0.0
    %811 = vmatprep.subr.mxu0 0.0
    %812 = vmatpush1.msra.mxu0 0.0
    %813 = vmatprep.subr.mxu0 0.0
    %814 = vmatpush1.msra.mxu0 0.0
    %815 = vmatprep.subr.mxu0 0.0
    %816 = vmatpush1.msra.mxu0 0.0
    %817 = vmatprep.mubr.f32.mxu0 0.0
    %818 = vmatmul.mubr.f32.gmra.mrb[0].mxu0 %v40
    %v819 = vpop.f32.mrb[0].mxu0
    %v820 = vadd.f32 0.0, %v819
    %v821 = vpop.f32.mrb[0].mxu0
    %822 = vdwg.mxu0
    %823 = vmatprep.subr.mxu0 0.0
    %824 = vmatpush1.msra.mxu0 %v752
    %825 = vmatprep.subr.mxu0 0.0
    %826 = vmatpush1.msra.mxu0 0.0
    %827 = vmatprep.subr.mxu0 0.0
    %828 = vmatpush1.msra.mxu0 0.0
    %829 = vmatprep.subr.mxu0 0.0
    %830 = vmatpush1.msra.mxu0 0.0
    %831 = vmatprep.subr.mxu0 0.0
    %832 = vmatpush1.msra.mxu0 0.0
    %833 = vmatprep.subr.mxu0 0.0
    %834 = vmatpush1.msra.mxu0 0.0
    %835 = vmatprep.subr.mxu0 0.0
    %836 = vmatpush1.msra.mxu0 0.0
    %837 = vmatprep.subr.mxu0 0.0
    %838 = vmatpush1.msra.mxu0 0.0
    %839 = vmatprep.subr.mxu0 0.0
    %840 = vmatpush1.msra.mxu0 0.0
    %841 = vmatprep.subr.mxu0 0.0
    %842 = vmatpush1.msra.mxu0 0.0
    %843 = vmatprep.subr.mxu0 0.0
    %844 = vmatpush1.msra.mxu0 0.0
    %845 = vmatprep.subr.mxu0 0.0
    %846 = vmatpush1.msra.mxu0 0.0
    %847 = vmatprep.subr.mxu0 0.0
    %848 = vmatpush1.msra.mxu0 0.0
    %849 = vmatprep.subr.mxu0 0.0
    %850 = vmatpush1.msra.mxu0 0.0
    %851 = vmatprep.subr.mxu0 0.0
    %852 = vmatpush1.msra.mxu0 0.0
    %853 = vmatprep.subr.mxu0 0.0
    %854 = vmatpush1.msra.mxu0 0.0
    %855 = vmatprep.subr.mxu0 0.0
    %856 = vmatpush1.msra.mxu0 0.0
    %857 = vmatprep.subr.mxu0 0.0
    %858 = vmatpush1.msra.mxu0 0.0
    %859 = vmatprep.subr.mxu0 0.0
    %860 = vmatpush1.msra.mxu0 0.0
    %861 = vmatprep.subr.mxu0 0.0
    %862 = vmatpush1.msra.mxu0 0.0
    %863 = vmatprep.subr.mxu0 0.0
    %864 = vmatpush1.msra.mxu0 0.0
    %865 = vmatprep.subr.mxu0 0.0
    %866 = vmatpush1.msra.mxu0 0.0
    %867 = vmatprep.subr.mxu0 0.0
    %868 = vmatpush1.msra.mxu0 0.0
    %869 = vmatprep.subr.mxu0 0.0
    %870 = vmatpush1.msra.mxu0 0.0
    %871 = vmatprep.subr.mxu0 0.0
    %872 = vmatpush1.msra.mxu0 0.0
    %873 = vmatprep.subr.mxu0 0.0
    %874 = vmatpush1.msra.mxu0 0.0
    %875 = vmatprep.subr.mxu0 0.0
    %876 = vmatpush1.msra.mxu0 0.0
    %877 = vmatprep.subr.mxu0 0.0
    %878 = vmatpush1.msra.mxu0 0.0
    %879 = vmatprep.subr.mxu0 0.0
    %880 = vmatpush1.msra.mxu0 0.0
    %881 = vmatprep.subr.mxu0 0.0
    %882 = vmatpush1.msra.mxu0 0.0
    %883 = vmatprep.subr.mxu0 0.0
    %884 = vmatpush1.msra.mxu0 0.0
    %885 = vmatprep.subr.mxu0 0.0
    %886 = vmatpush1.msra.mxu0 0.0
    %887 = vmatprep.mubr.f32.mxu0 0.0
    %888 = vmatmul.mubr.f32.gmra.mrb[0].mxu0 %v113
    %v889 = vpop.f32.mrb[0].mxu0
    %v890 = vadd.f32 0.0, %v889
    %v891 = vpop.f32.mrb[0].mxu0
    %892 = vdwg.mxu0
    %v893 = vadd.f32 %v534, %v820
    %v894 = vadd.f32 %v604, %v890
    %v897 = vrot.slane %v750, 7
    %vm898 = vcmask 1041409
    %v899 = vsel %vm898, %v897, %v749
    %vm901 = vcmask 25600
    %902 = vst.msk [vmem:[#allocation2] sm:$0x3] %vm901, %v899
    %v905 = vrot.slane %v894, 7
    %v906 = vsel %vm898, %v905, %v893
    %908 = vst.msk [vmem:[#allocation4] sm:$0x3] %vm901, %v906
    // Predicated region
    $region30: #{tpu_custom_call.1} parent=1 // pred_check
      _
    $region31: #{tpu_custom_call.1} parent=1 // pred_check_branch
      %910 = sbr.rel (0) target = $region33
    $region32: #{tpu_custom_call.1} parent=1 // pred_region
      %s912 = ssub.s32 32, 32
      %913 = vsyncadd [#allocation3], %s912
      %s915 = sshll.u32 [#allocation2], 4
      %s916 = int_to_ptr.vmem [resolvable:$true] %s915
      %918 = dma.vmem_to_hbm [thread:$0]  %s916, 32, %s7, [#allocation3]
    $region33: #{tpu_custom_call.1} parent=1 // pred_fallthru
      _
    // Predicated region
    $region34: #{tpu_custom_call.1} parent=1 // pred_check
      _
    $region35: #{tpu_custom_call.1} parent=1 // pred_check_branch
      %920 = sbr.rel (0) target = $region37
    $region36: #{tpu_custom_call.1} parent=1 // pred_region
      %s922 = ssub.s32 32, 32
      %923 = vsyncadd [#allocation5], %s922
      %s925 = sshll.u32 [#allocation4], 4
      %s926 = int_to_ptr.vmem [resolvable:$true] %s925
      %928 = dma.vmem_to_hbm [thread:$0]  %s926, 32, %s8, [#allocation5]
    $region37: #{tpu_custom_call.1} parent=1 // pred_fallthru
      _
    // Predicated region
    $region38: #{tpu_custom_call.1} parent=1 // pred_check
      _
    $region39: #{tpu_custom_call.1} parent=1 // pred_check_branch
      %930 = sbr.rel (0) target = $region41
    $region40: #{tpu_custom_call.1} parent=1 // pred_region
      %931 = dma.done [#allocation3], 32
    $region41: #{tpu_custom_call.1} parent=1 // pred_fallthru
      _
    // Predicated region
    $region42: #{tpu_custom_call.1} parent=1 // pred_check
      _
    $region43: #{tpu_custom_call.1} parent=1 // pred_check_branch
      %933 = sbr.rel (0) target = $region45
    $region44: #{tpu_custom_call.1} parent=1 // pred_region
      %934 = dma.done [#allocation5], 32
    $region45: #{tpu_custom_call.1} parent=1 // pred_fallthru
      _
    %935 = vsyncpa [#allocation3], 1
    %936 = vsyncpa [#allocation5], 1

</llo_original>
